<compile_context>
chip_gen: v6e
topology: v6e:2x2x1
jax: 0.10.0
libtpu: 0.0.40
codegen_flags: <defaults>
</compile_context>

<pallas_src>
import jax
import jax.numpy as jnp
from jax.experimental import pallas as pl
from jax.experimental.pallas import tpu as pltpu

INPUT_DIM = 32
LATENT_DIM = 10
HIDDEN = (512, 256, 128)
LANE = 128
SUBLANE = 16  # bf16 sublane packing (16, 128); also valid for f32 tiles.


def _round_up(x, m):
    return (x + m - 1) // m * m


def encoder_kernel(x_ref,
                   w1_ref, b1_ref,
                   w2_ref, b2_ref,
                   w3_ref, b3_ref,
                   w4_ref, b4_ref,
                   o_ref):
    # bf16 operands on the MXU, f32 accumulation throughout.
    x = x_ref[...].astype(jnp.bfloat16)
    # Layer 1: Linear(input_dim, 512) + ReLU
    h = jnp.dot(x, w1_ref[...], preferred_element_type=jnp.float32)
    h = jnp.maximum(h + b1_ref[...], 0.0).astype(jnp.bfloat16)
    # Layer 2: Linear(512, 256) + ReLU
    h = jnp.dot(h, w2_ref[...], preferred_element_type=jnp.float32)
    h = jnp.maximum(h + b2_ref[...], 0.0).astype(jnp.bfloat16)
    # Layer 3: Linear(256, 128) + ReLU
    h = jnp.dot(h, w3_ref[...], preferred_element_type=jnp.float32)
    h = jnp.maximum(h + b3_ref[...], 0.0).astype(jnp.bfloat16)
    # Layer 4: Linear(128, latent_padded) -- no activation (lane-dense, padded to 128)
    z = jnp.dot(h, w4_ref[...], preferred_element_type=jnp.float32) + b4_ref[...]
    o_ref[...] = z.astype(o_ref.dtype)


def init_linear_params(key, in_dim, out_dim):
    # Deterministic init mirroring torch.nn.Linear default: U(-1/sqrt(in), +1/sqrt(in))
    kw, kb = jax.random.split(key)
    bound = 1.0 / jnp.sqrt(jnp.float32(in_dim))
    w = jax.random.uniform(kw, (in_dim, out_dim), jnp.float32, -bound, bound)
    b = jax.random.uniform(kb, (1, out_dim), jnp.float32, -bound, bound)
    return w, b


def make_encoder_params(key, input_dim=INPUT_DIM, latent_dim=LATENT_DIM):
    dims = (input_dim,) + HIDDEN + (latent_dim,)
    keys = jax.random.split(key, len(dims) - 1)
    params = []
    for k, din, dout in zip(keys, dims[:-1], dims[1:]):
        params.extend(init_linear_params(k, din, dout))
    return tuple(params)  # (w1, b1, w2, b2, w3, b3, w4, b4)


def encoder_forward(x, params, *, block_batch=1024, out_dtype=jnp.bfloat16,
                    return_padded=False):
    """Fused encoder forward.

    Returns (batch, latent_dim) in `out_dtype` by default. If the consumer can
    take the lane-padded slab directly, pass return_padded=True to skip the
    extra XLA slice pass and get the (b_pad, 128) kernel output as-is.
    """
    w1, b1, w2, b2, w3, b3, w4, b4 = params
    batch, in_dim = x.shape
    latent_dim = w4.shape[-1]

    # bf16 weights for MXU throughput (biases stay f32; added post-accumulation).
    w1b = w1.astype(jnp.bfloat16)
    w2b = w2.astype(jnp.bfloat16)
    w3b = w3.astype(jnp.bfloat16)

    # Lane-dense final layer: zero-pad latent dim out to a full 128-lane slab.
    out_pad = _round_up(latent_dim, LANE)
    w4p = jnp.zeros((w4.shape[0], out_pad), jnp.bfloat16)
    w4p = w4p.at[:, :latent_dim].set(w4.astype(jnp.bfloat16))
    b4p = jnp.zeros((1, out_pad), jnp.float32).at[:, :latent_dim].set(b4)

    # Batch tiling: pad the batch to a multiple of the tile so the grid is exact.
    # tb=1024 by default: ~8 MiB total VMEM footprint (resident weights + f32
    # intermediates + double-buffered activation tiles) -> safe on v5e's 16 MiB
    # default scoped VMEM and well inside v6e/v7x limits.
    tb = _round_up(min(block_batch, _round_up(batch, SUBLANE)), SUBLANE)
    b_pad = _round_up(batch, tb)
    if b_pad != batch:
        x = jnp.pad(x, ((0, b_pad - batch), (0, 0)))
    grid = (b_pad // tb,)

    def resident(shape):
        # Weights/biases: same block every grid step -> DMA'd once, stay in VMEM.
        return pl.BlockSpec(shape, lambda i: (0, 0))

    out_itemsize = jnp.dtype(out_dtype).itemsize
    x_itemsize = x.dtype.itemsize
    flops = 2 * b_pad * (in_dim * HIDDEN[0] + HIDDEN[0] * HIDDEN[1]
                         + HIDDEN[1] * HIDDEN[2] + HIDDEN[2] * out_pad)
    weight_bytes = sum(int(a.size) * a.dtype.itemsize
                       for a in (w1b, b1, w2b, b2, w3b, b3, w4p, b4p))
    bytes_accessed = (int(x.size) * x_itemsize + weight_bytes
                      + b_pad * out_pad * out_itemsize)

    out = pl.pallas_call(
        encoder_kernel,
        out_shape=jax.ShapeDtypeStruct((b_pad, out_pad), out_dtype),
        grid=grid,
        in_specs=[
            pl.BlockSpec((tb, in_dim), lambda i: (i, 0)),
            resident(w1b.shape), resident(b1.shape),
            resident(w2b.shape), resident(b2.shape),
            resident(w3b.shape), resident(b3.shape),
            resident(w4p.shape), resident(b4p.shape),
        ],
        out_specs=pl.BlockSpec((tb, out_pad), lambda i: (i, 0)),
        compiler_params=pltpu.CompilerParams(
            dimension_semantics=("parallel",)),
        cost_estimate=pl.CostEstimate(flops=flops, transcendentals=0,
                                      bytes_accessed=bytes_accessed),
    )(x, w1b, b1, w2b, b2, w3b, b3, w4p, b4p)

    if return_padded:
        # Padded batch rows contain bias/ReLU garbage; padded lanes are exact
        # zeros (w4p/b4p zero-padded). Caller is responsible for ignoring both.
        return out

    # Take the minimal slice needed to restore the module's output contract.
    if b_pad == batch:
        return out[:, :latent_dim]
    return out[:batch, :latent_dim]


def encoder_ref(x, params):
    # Pure-JAX reference mirroring the kernel's bf16-weight / f32-accumulate math.
    w1, b1, w2, b2, w3, b3, w4, b4 = params

    def mm(a, w):
        return jnp.dot(a.astype(jnp.bfloat16), w.astype(jnp.bfloat16),
                       preferred_element_type=jnp.float32)

    h = jnp.maximum(mm(x, w1) + b1, 0.0)
    h = jnp.maximum(mm(h, w2) + b2, 0.0)
    h = jnp.maximum(mm(h, w3) + b3, 0.0)
    return mm(h, w4) + b4


if __name__ == "__main__":
    key = jax.random.PRNGKey(0)
    k_x, k_p = jax.random.split(key)
    batch = 8
    x = jax.random.normal(k_x, (batch, INPUT_DIM), jnp.float32)
    params = make_encoder_params(k_p, INPUT_DIM, LATENT_DIM)

    z = encoder_forward(x, params)
    jax.block_until_ready(z)

    z_ref = encoder_ref(x, params)
    assert z.shape == (batch, LATENT_DIM)
    # bf16 output rounding on top of bf16-matmul math: ~2^-8 relative error.
    assert jnp.allclose(z.astype(jnp.float32), z_ref, atol=2e-2, rtol=2e-2)
    print("KERNEL_OK")
</pallas_src>

<mosaic_0001>
module attributes {stable_mosaic.version = 11 : i64} {
  func.func @encoder_kernel(%arg0: i32, %arg1: memref<16x32xf32, #tpu.memory_space<vmem>>, %arg2: memref<32x512xbf16, #tpu.memory_space<vmem>>, %arg3: memref<1x512xf32, #tpu.memory_space<vmem>>, %arg4: memref<512x256xbf16, #tpu.memory_space<vmem>>, %arg5: memref<1x256xf32, #tpu.memory_space<vmem>>, %arg6: memref<256x128xbf16, #tpu.memory_space<vmem>>, %arg7: memref<1x128xf32, #tpu.memory_space<vmem>>, %arg8: memref<128x128xbf16, #tpu.memory_space<vmem>>, %arg9: memref<1x128xf32, #tpu.memory_space<vmem>>, %arg10: memref<16x128xbf16, #tpu.memory_space<vmem>>) attributes {dimension_semantics = [#tpu.dimension_semantics<parallel>], iteration_bounds = array<i64: 1>, scalar_prefetch = 0 : i64, scratch_operands = 0 : i64, tpu.core_type = #tpu.core_type<tc>, window_params = [{transform_indices = @transform_0, window_bounds = array<i64: 16, 32>}, {pipeline_mode = #tpu.pipeline_mode<synchronous>, transform_indices = @transform_1, window_bounds = array<i64: 32, 512>}, {pipeline_mode = #tpu.pipeline_mode<synchronous>, transform_indices = @transform_2, window_bounds = array<i64: 1, 512>}, {pipeline_mode = #tpu.pipeline_mode<synchronous>, transform_indices = @transform_3, window_bounds = array<i64: 512, 256>}, {pipeline_mode = #tpu.pipeline_mode<synchronous>, transform_indices = @transform_4, window_bounds = array<i64: 1, 256>}, {pipeline_mode = #tpu.pipeline_mode<synchronous>, transform_indices = @transform_5, window_bounds = array<i64: 256, 128>}, {pipeline_mode = #tpu.pipeline_mode<synchronous>, transform_indices = @transform_6, window_bounds = array<i64: 1, 128>}, {pipeline_mode = #tpu.pipeline_mode<synchronous>, transform_indices = @transform_7, window_bounds = array<i64: 128, 128>}, {pipeline_mode = #tpu.pipeline_mode<synchronous>, transform_indices = @transform_8, window_bounds = array<i64: 1, 128>}, {transform_indices = @transform_9, window_bounds = array<i64: 16, 128>}]} {
    %c0 = arith.constant 0 : index
    %c0_0 = arith.constant 0 : index
    %0 = vector.load %arg1[%c0, %c0_0] : memref<16x32xf32, #tpu.memory_space<vmem>>, vector<16x32xf32>
    %1 = arith.truncf %0 : vector<16x32xf32> to vector<16x32xbf16>
    %c0_1 = arith.constant 0 : index
    %c0_2 = arith.constant 0 : index
    %2 = vector.load %arg2[%c0_1, %c0_2] : memref<32x512xbf16, #tpu.memory_space<vmem>>, vector<32x512xbf16>
    %cst = arith.constant dense<0.000000e+00> : vector<16x512xf32>
    %3 = tpu.matmul %1, %2, %cst {dimension_numbers = #tpu.dot_dimension_numbers<[1], [0], [0], [1], [0, 0, 1, 1], [], []>} : vector<16x32xbf16>, vector<32x512xbf16>, vector<16x512xf32> -> vector<16x512xf32>
    %c0_3 = arith.constant 0 : index
    %c0_4 = arith.constant 0 : index
    %4 = vector.load %arg3[%c0_3, %c0_4] : memref<1x512xf32, #tpu.memory_space<vmem>>, vector<1x512xf32>
    %5 = vector.broadcast %4 : vector<1x512xf32> to vector<16x512xf32>
    %6 = arith.addf %3, %5 : vector<16x512xf32>
    %cst_5 = arith.constant 0.000000e+00 : f32
    %7 = vector.broadcast %cst_5 : f32 to vector<16x512xf32>
    %8 = arith.maximumf %6, %7 : vector<16x512xf32>
    %9 = arith.truncf %8 : vector<16x512xf32> to vector<16x512xbf16>
    %c0_6 = arith.constant 0 : index
    %c0_7 = arith.constant 0 : index
    %10 = vector.load %arg4[%c0_6, %c0_7] : memref<512x256xbf16, #tpu.memory_space<vmem>>, vector<512x256xbf16>
    %cst_8 = arith.constant dense<0.000000e+00> : vector<16x256xf32>
    %11 = tpu.matmul %9, %10, %cst_8 {dimension_numbers = #tpu.dot_dimension_numbers<[1], [0], [0], [1], [0, 0, 1, 1], [], []>} : vector<16x512xbf16>, vector<512x256xbf16>, vector<16x256xf32> -> vector<16x256xf32>
    %c0_9 = arith.constant 0 : index
    %c0_10 = arith.constant 0 : index
    %12 = vector.load %arg5[%c0_9, %c0_10] : memref<1x256xf32, #tpu.memory_space<vmem>>, vector<1x256xf32>
    %13 = vector.broadcast %12 : vector<1x256xf32> to vector<16x256xf32>
    %14 = arith.addf %11, %13 : vector<16x256xf32>
    %cst_11 = arith.constant 0.000000e+00 : f32
    %15 = vector.broadcast %cst_11 : f32 to vector<16x256xf32>
    %16 = arith.maximumf %14, %15 : vector<16x256xf32>
    %17 = arith.truncf %16 : vector<16x256xf32> to vector<16x256xbf16>
    %c0_12 = arith.constant 0 : index
    %c0_13 = arith.constant 0 : index
    %18 = vector.load %arg6[%c0_12, %c0_13] : memref<256x128xbf16, #tpu.memory_space<vmem>>, vector<256x128xbf16>
    %cst_14 = arith.constant dense<0.000000e+00> : vector<16x128xf32>
    %19 = tpu.matmul %17, %18, %cst_14 {dimension_numbers = #tpu.dot_dimension_numbers<[1], [0], [0], [1], [0, 0, 1, 1], [], []>} : vector<16x256xbf16>, vector<256x128xbf16>, vector<16x128xf32> -> vector<16x128xf32>
    %c0_15 = arith.constant 0 : index
    %c0_16 = arith.constant 0 : index
    %20 = vector.load %arg7[%c0_15, %c0_16] : memref<1x128xf32, #tpu.memory_space<vmem>>, vector<1x128xf32>
    %21 = vector.broadcast %20 : vector<1x128xf32> to vector<16x128xf32>
    %22 = arith.addf %19, %21 : vector<16x128xf32>
    %cst_17 = arith.constant 0.000000e+00 : f32
    %23 = vector.broadcast %cst_17 : f32 to vector<16x128xf32>
    %24 = arith.maximumf %22, %23 : vector<16x128xf32>
    %25 = arith.truncf %24 : vector<16x128xf32> to vector<16x128xbf16>
    %c0_18 = arith.constant 0 : index
    %c0_19 = arith.constant 0 : index
    %26 = vector.load %arg8[%c0_18, %c0_19] : memref<128x128xbf16, #tpu.memory_space<vmem>>, vector<128x128xbf16>
    %cst_20 = arith.constant dense<0.000000e+00> : vector<16x128xf32>
    %27 = tpu.matmul %25, %26, %cst_20 {dimension_numbers = #tpu.dot_dimension_numbers<[1], [0], [0], [1], [0, 0, 1, 1], [], []>} : vector<16x128xbf16>, vector<128x128xbf16>, vector<16x128xf32> -> vector<16x128xf32>
    %c0_21 = arith.constant 0 : index
    %c0_22 = arith.constant 0 : index
    %28 = vector.load %arg9[%c0_21, %c0_22] : memref<1x128xf32, #tpu.memory_space<vmem>>, vector<1x128xf32>
    %29 = vector.broadcast %28 : vector<1x128xf32> to vector<16x128xf32>
    %30 = arith.addf %27, %29 : vector<16x128xf32>
    %31 = arith.truncf %30 : vector<16x128xf32> to vector<16x128xbf16>
    %c0_23 = arith.constant 0 : index
    %c0_24 = arith.constant 0 : index
    %32 = vector.load %arg10[%c0_23, %c0_24] : memref<16x128xbf16, #tpu.memory_space<vmem>>, vector<16x128xbf16>
    tpu.vector_store %arg10[%c0_23, %c0_24], %31 {strides = array<i32>} : memref<16x128xbf16, #tpu.memory_space<vmem>>, vector<16x128xbf16>,
    return
  }
  func.func @transform_0(%arg0: i32) -> (i32, i32) {
    %c0_i32 = arith.constant 0 : i32
    %c0_i32_0 = arith.constant 0 : i32
    return %arg0, %c0_i32 : i32, i32
  }
  func.func @transform_1(%arg0: i32) -> (i32, i32) {
    %c0_i32 = arith.constant 0 : i32
    %c0_i32_0 = arith.constant 0 : i32
    %c0_i32_1 = arith.constant 0 : i32
    return %c0_i32, %c0_i32_0 : i32, i32
  }
  func.func @transform_2(%arg0: i32) -> (i32, i32) {
    %c0_i32 = arith.constant 0 : i32
    %c0_i32_0 = arith.constant 0 : i32
    %c0_i32_1 = arith.constant 0 : i32
    return %c0_i32, %c0_i32_0 : i32, i32
  }
  func.func @transform_3(%arg0: i32) -> (i32, i32) {
    %c0_i32 = arith.constant 0 : i32
    %c0_i32_0 = arith.constant 0 : i32
    %c0_i32_1 = arith.constant 0 : i32
    return %c0_i32, %c0_i32_0 : i32, i32
  }
  func.func @transform_4(%arg0: i32) -> (i32, i32) {
    %c0_i32 = arith.constant 0 : i32
    %c0_i32_0 = arith.constant 0 : i32
    %c0_i32_1 = arith.constant 0 : i32
    return %c0_i32, %c0_i32_0 : i32, i32
  }
  func.func @transform_5(%arg0: i32) -> (i32, i32) {
    %c0_i32 = arith.constant 0 : i32
    %c0_i32_0 = arith.constant 0 : i32
    %c0_i32_1 = arith.constant 0 : i32
    return %c0_i32, %c0_i32_0 : i32, i32
  }
  func.func @transform_6(%arg0: i32) -> (i32, i32) {
    %c0_i32 = arith.constant 0 : i32
    %c0_i32_0 = arith.constant 0 : i32
    %c0_i32_1 = arith.constant 0 : i32
    return %c0_i32, %c0_i32_0 : i32, i32
  }
  func.func @transform_7(%arg0: i32) -> (i32, i32) {
    %c0_i32 = arith.constant 0 : i32
    %c0_i32_0 = arith.constant 0 : i32
    %c0_i32_1 = arith.constant 0 : i32
    return %c0_i32, %c0_i32_0 : i32, i32
  }
  func.func @transform_8(%arg0: i32) -> (i32, i32) {
    %c0_i32 = arith.constant 0 : i32
    %c0_i32_0 = arith.constant 0 : i32
    %c0_i32_1 = arith.constant 0 : i32
    return %c0_i32, %c0_i32_0 : i32, i32
  }
  func.func @transform_9(%arg0: i32) -> (i32, i32) {
    %c0_i32 = arith.constant 0 : i32
    %c0_i32_0 = arith.constant 0 : i32
    return %arg0, %c0_i32 : i32, i32
  }
}

</mosaic_0001>

<llo_original>
// kernel: tpu_custom_call.1
$region0: #{tpu_custom_call.1}
  #allocation0 [shape = 'u32[]', space=smem, size = 0x4, offset = 0x4, fixed_abs, tag = 'smem constant byte address 0x4 - core index']
  #allocation1 [shape = 'u32[144,128]{1,0:T(1,128)}', space=vmem, size = 0x12000, scoped, tag = 'internal scratch']
  %s0 = inlined_call_operand.hbm [shape: f32[16,32], index: 0, kind: input, shape index: {}]
  %s1 = inlined_call_operand.hbm [shape: bf16[32,512], index: 1, kind: input, shape index: {}]
  %s2 = inlined_call_operand.hbm [shape: f32[1,512], index: 2, kind: input, shape index: {}]
  %s3 = inlined_call_operand.hbm [shape: bf16[512,256], index: 3, kind: input, shape index: {}]
  %s4 = inlined_call_operand.vmem [shape: f32[1,256], index: 4, kind: input, shape index: {}]
  %s5 = inlined_call_operand.hbm [shape: bf16[256,128], index: 5, kind: input, shape index: {}]
  %s6 = inlined_call_operand.vmem [shape: f32[1,128], index: 6, kind: input, shape index: {}]
  %s7 = inlined_call_operand.hbm [shape: bf16[128,128], index: 7, kind: input, shape index: {}]
  %s8 = inlined_call_operand.vmem [shape: f32[1,128], index: 8, kind: input, shape index: {}]
  %s9 = inlined_call_operand.hbm [shape: bf16[16,128], index: 9, kind: output, shape index: {}]
  %s10 = sld [smem:[#allocation0]]
  $region70: #{tpu_custom_call.1} parent=0
    _
  %s12 = ssub.s32 1, %s10
  %s13 = scalar_select 0, %s12, %s10
  $region1: #{tpu_custom_call.1} parent=0
    #allocation2 [shape = 'u8[8192]{0}', space=vmem, size = 0x2000, scoped, tag = 'input window, operand 0, single buffered']
    #allocation3 [shape = 's32[1]{0}', space=sflag, size = 0x4, scoped, tag = 'scoped memory for tpu_custom_call.1']
    #allocation4 [shape = 's32[1]{0}', space=sflag, size = 0x4, scoped, tag = 'scoped memory for tpu_custom_call.1']
    #allocation5 [shape = 'u8[32768]{0}', space=vmem, size = 0x8000, scoped, tag = 'input window, operand 1, single buffered']
    #allocation6 [shape = 's32[1]{0}', space=sflag, size = 0x4, scoped, tag = 'scoped memory for tpu_custom_call.1']
    #allocation7 [shape = 'u8[2048]{0}', space=vmem, size = 0x800, scoped, tag = 'input window, operand 2, single buffered']
    #allocation8 [shape = 'u8[262144]{0}', space=vmem, size = 0x40000, scoped, tag = 'input window, operand 3, single buffered']
    #allocation9 [shape = 's32[1]{0}', space=sflag, size = 0x4, scoped, tag = 'scoped memory for tpu_custom_call.1']
    #allocation10 [shape = 'u8[65536]{0}', space=vmem, size = 0x10000, scoped, tag = 'input window, operand 5, single buffered']
    #allocation11 [shape = 'u8[32768]{0}', space=vmem, size = 0x8000, scoped, tag = 'input window, operand 7, single buffered']
    #allocation12 [shape = 's32[1]{0}', space=sflag, size = 0x4, scoped, tag = 'scoped memory for tpu_custom_call.1']
    #allocation13 [shape = 'u8[4096]{0}', space=vmem, size = 0x1000, scoped, tag = 'output window, operand 0, single buffered']
    %14 = vsyncpa [#allocation3], 0
    %15 = vsyncpa [#allocation6], 0
    %16 = vsyncpa [#allocation9], 0
    %17 = vsyncpa [#allocation12], 0
    %18 = vsyncpa [#allocation4], 0
    // Predicated region
    $region2: #{tpu_custom_call.1} parent=1 // pred_check
      _
    $region3: #{tpu_custom_call.1} parent=1 // pred_check_branch
      %20 = sbr.rel (0) target = $region5
    $region4: #{tpu_custom_call.1} parent=1 // pred_region
      %s22 = ssub.s32 256, 256
      %23 = vsyncadd [#allocation3], %s22
      %s24 = sshll.u32 [#allocation2], 4
      %s25 = int_to_ptr.vmem [resolvable:$true] %s24
      %30 = dma.hbm_to_vmem [thread:$0]  %s0, 256, %s25, [#allocation3], 128, 128, 8
    $region5: #{tpu_custom_call.1} parent=1 // pred_fallthru
      _
    // Predicated region
    $region6: #{tpu_custom_call.1} parent=1 // pred_check
      _
    $region7: #{tpu_custom_call.1} parent=1 // pred_check_branch
      %32 = sbr.rel (0) target = $region9
    $region8: #{tpu_custom_call.1} parent=1 // pred_region
      %s34 = ssub.s32 1024, 1024
      %35 = vsyncadd [#allocation6], %s34
      %s36 = sshll.u32 [#allocation5], 4
      %s37 = int_to_ptr.vmem [resolvable:$true] %s36
      %42 = dma.hbm_to_vmem [thread:$0]  %s1, 1024, %s37, [#allocation6], 256, 256, 16
    $region9: #{tpu_custom_call.1} parent=1 // pred_fallthru
      _
    // Predicated region
    $region10: #{tpu_custom_call.1} parent=1 // pred_check
      _
    $region11: #{tpu_custom_call.1} parent=1 // pred_check_branch
      %44 = sbr.rel (0) target = $region13
    $region12: #{tpu_custom_call.1} parent=1 // pred_region
      %s46 = ssub.s32 64, 64
      %47 = vsyncadd [#allocation6], %s46
      %s49 = sshll.u32 [#allocation7], 4
      %s50 = int_to_ptr.vmem [resolvable:$true] %s49
      %52 = dma.hbm_to_vmem [thread:$0]  %s2, 64, %s50, [#allocation6]
    $region13: #{tpu_custom_call.1} parent=1 // pred_fallthru
      _
    // Predicated region
    $region14: #{tpu_custom_call.1} parent=1 // pred_check
      _
    $region15: #{tpu_custom_call.1} parent=1 // pred_check_branch
      %54 = sbr.rel (0) target = $region17
    $region16: #{tpu_custom_call.1} parent=1 // pred_region
      %s56 = ssub.s32 8192, 8192
      %57 = vsyncadd [#allocation9], %s56
      %s58 = sshll.u32 [#allocation8], 4
      %s59 = int_to_ptr.vmem [resolvable:$true] %s58
      %64 = dma.hbm_to_vmem [thread:$0]  %s3, 8192, %s59, [#allocation9], 128, 128, 8
    $region17: #{tpu_custom_call.1} parent=1 // pred_fallthru
      _
    // Predicated region
    $region18: #{tpu_custom_call.1} parent=1 // pred_check
      _
    $region19: #{tpu_custom_call.1} parent=1 // pred_check_branch
      %66 = sbr.rel (0) target = $region21
    $region20: #{tpu_custom_call.1} parent=1 // pred_region
      _
    $region21: #{tpu_custom_call.1} parent=1 // pred_fallthru
      _
    // Predicated region
    $region22: #{tpu_custom_call.1} parent=1 // pred_check
      _
    $region23: #{tpu_custom_call.1} parent=1 // pred_check_branch
      %68 = sbr.rel (0) target = $region25
    $region24: #{tpu_custom_call.1} parent=1 // pred_region
      %s70 = ssub.s32 2048, 2048
      %71 = vsyncadd [#allocation9], %s70
      %s72 = sshll.u32 [#allocation10], 4
      %s73 = int_to_ptr.vmem [resolvable:$true] %s72
      %78 = dma.hbm_to_vmem [thread:$0]  %s5, 2048, %s73, [#allocation9], 64, 64, 4
    $region25: #{tpu_custom_call.1} parent=1 // pred_fallthru
      _
    // Predicated region
    $region26: #{tpu_custom_call.1} parent=1 // pred_check
      _
    $region27: #{tpu_custom_call.1} parent=1 // pred_check_branch
      %80 = sbr.rel (0) target = $region29
    $region28: #{tpu_custom_call.1} parent=1 // pred_region
      _
    $region29: #{tpu_custom_call.1} parent=1 // pred_fallthru
      _
    // Predicated region
    $region30: #{tpu_custom_call.1} parent=1 // pred_check
      _
    $region31: #{tpu_custom_call.1} parent=1 // pred_check_branch
      %82 = sbr.rel (0) target = $region33
    $region32: #{tpu_custom_call.1} parent=1 // pred_region
      %s84 = ssub.s32 1024, 1024
      %85 = vsyncadd [#allocation12], %s84
      %s86 = sshll.u32 [#allocation11], 4
      %s87 = int_to_ptr.vmem [resolvable:$true] %s86
      %92 = dma.hbm_to_vmem [thread:$0]  %s7, 1024, %s87, [#allocation12], 64, 64, 4
    $region33: #{tpu_custom_call.1} parent=1 // pred_fallthru
      _
    // Predicated region
    $region34: #{tpu_custom_call.1} parent=1 // pred_check
      _
    $region35: #{tpu_custom_call.1} parent=1 // pred_check_branch
      %94 = sbr.rel (0) target = $region37
    $region36: #{tpu_custom_call.1} parent=1 // pred_region
      _
    $region37: #{tpu_custom_call.1} parent=1 // pred_fallthru
      _
    // Predicated region
    $region38: #{tpu_custom_call.1} parent=1 // pred_check
      _
    $region39: #{tpu_custom_call.1} parent=1 // pred_check_branch
      %96 = sbr.rel (0) target = $region41
    $region40: #{tpu_custom_call.1} parent=1 // pred_region
      %97 = dma.done [#allocation3], 256
    $region41: #{tpu_custom_call.1} parent=1 // pred_fallthru
      _
    // Predicated region
    $region42: #{tpu_custom_call.1} parent=1 // pred_check
      _
    $region43: #{tpu_custom_call.1} parent=1 // pred_check_branch
      %99 = sbr.rel (0) target = $region45
    $region44: #{tpu_custom_call.1} parent=1 // pred_region
      %100 = dma.done [#allocation6], 1024
    $region45: #{tpu_custom_call.1} parent=1 // pred_fallthru
      _
    // Predicated region
    $region46: #{tpu_custom_call.1} parent=1 // pred_check
      _
    $region47: #{tpu_custom_call.1} parent=1 // pred_check_branch
      %102 = sbr.rel (0) target = $region49
    $region48: #{tpu_custom_call.1} parent=1 // pred_region
      %103 = dma.done [#allocation6], 64
    $region49: #{tpu_custom_call.1} parent=1 // pred_fallthru
      _
    // Predicated region
    $region50: #{tpu_custom_call.1} parent=1 // pred_check
      _
    $region51: #{tpu_custom_call.1} parent=1 // pred_check_branch
      %105 = sbr.rel (0) target = $region53
    $region52: #{tpu_custom_call.1} parent=1 // pred_region
      %106 = dma.done [#allocation9], 8192
    $region53: #{tpu_custom_call.1} parent=1 // pred_fallthru
      _
    // Predicated region
    $region54: #{tpu_custom_call.1} parent=1 // pred_check
      _
    $region55: #{tpu_custom_call.1} parent=1 // pred_check_branch
      %108 = sbr.rel (0) target = $region57
    $region56: #{tpu_custom_call.1} parent=1 // pred_region
      %109 = dma.done [#allocation9], 2048
    $region57: #{tpu_custom_call.1} parent=1 // pred_fallthru
      _
    // Predicated region
    $region58: #{tpu_custom_call.1} parent=1 // pred_check
      _
    $region59: #{tpu_custom_call.1} parent=1 // pred_check_branch
      %111 = sbr.rel (0) target = $region61
    $region60: #{tpu_custom_call.1} parent=1 // pred_region
      %112 = dma.done [#allocation12], 1024
    $region61: #{tpu_custom_call.1} parent=1 // pred_fallthru
      _
    %v114 = vld [vmem:[#allocation2] sm:$0xff]
    %v115 = vld [vmem:[#allocation2 + $0x8] sm:$0xff]
    %v116 = vpack.c.bf16 %v115, %v114
    %v117 = vld [vmem:[#allocation5] sm:$0xff]
    %v118 = vld [vmem:[#allocation5 + $0x8] sm:$0xff]
    %v119 = vld [vmem:[#allocation5 + $0x10] sm:$0xff]
    %v120 = vld [vmem:[#allocation5 + $0x18] sm:$0xff]
    %v121 = vld [vmem:[#allocation5 + $0x20] sm:$0xff]
    %v122 = vld [vmem:[#allocation5 + $0x28] sm:$0xff]
    %v123 = vld [vmem:[#allocation5 + $0x30] sm:$0xff]
    %v124 = vld [vmem:[#allocation5 + $0x38] sm:$0xff]
    %v125 = vld [vmem:[#allocation7] sm:$0xf]
    %v127 = vlaneseq
    %v128 = vshrl.u32 %v127, 7
    %v129 = vsub.s32 0, %v128
    %v130 = vrot.slane %v125, %v129
    %v131 = vlaneseq
    %v132 = vshrl.u32 %v131, 7
    %v133 = vsub.s32 1, %v132
    %v134 = vrot.slane %v125, %v133
    %v135 = vlaneseq
    %v136 = vshrl.u32 %v135, 7
    %v137 = vsub.s32 2, %v136
    %v138 = vrot.slane %v125, %v137
    %v139 = vlaneseq
    %v140 = vshrl.u32 %v139, 7
    %v141 = vsub.s32 3, %v140
    %v142 = vrot.slane %v125, %v141
    %v155 = vunpack.c.l.b16 %v117
    %v156 = vunpack.c.h.b16 %v117
    %v157 = vunpack.c.l.b16 %v118
    %v158 = vunpack.c.h.b16 %v118
    %v159 = vunpack.c.l.b16 %v119
    %v160 = vunpack.c.h.b16 %v119
    %v161 = vunpack.c.l.b16 %v120
    %v162 = vunpack.c.h.b16 %v120
    %v163 = vunpack.c.l.b16 %v121
    %v164 = vunpack.c.h.b16 %v121
    %v165 = vunpack.c.l.b16 %v122
    %v166 = vunpack.c.h.b16 %v122
    %v167 = vunpack.c.l.b16 %v123
    %v168 = vunpack.c.h.b16 %v123
    %v169 = vunpack.c.l.b16 %v124
    %v170 = vunpack.c.h.b16 %v124
    %v171 = vpack.c.b16 %v159, %v155
    %v172 = vpack.c.b16 %v160, %v156
    %v173 = vpack.c.b16 %v161, %v157
    %v174 = vpack.c.b16 %v162, %v158
    %v175 = vpack.c.b16 %v167, %v163
    %v176 = vpack.c.b16 %v168, %v164
    %v177 = vpack.c.b16 %v169, %v165
    %v178 = vpack.c.b16 %v170, %v166
    %vm187 = vcmask 261120
    %v189 = vsel %vm187, %v116, 0
    %191 = vmatprep.subr.bf16.mxu0 0
    %192 = vmatpush1.bf16.msra.mxu0 0
    %193 = vmatprep.subr.bf16.mxu0 0
    %194 = vmatpush1.bf16.msra.mxu0 0
    %195 = vmatprep.subr.bf16.mxu0 0
    %196 = vmatpush1.bf16.msra.mxu0 0
    %197 = vmatprep.subr.bf16.mxu0 0
    %198 = vmatpush1.bf16.msra.mxu0 0
    %199 = vmatprep.subr.bf16.mxu0 0
    %200 = vmatpush1.bf16.msra.mxu0 0
    %201 = vmatprep.subr.bf16.mxu0 0
    %202 = vmatpush1.bf16.msra.mxu0 0
    %203 = vmatprep.subr.bf16.mxu0 %v176
    %204 = vmatpush1.bf16.msra.mxu0 %v175
    %205 = vmatprep.subr.bf16.mxu0 %v172
    %206 = vmatpush1.bf16.msra.mxu0 %v171
    %207 = vmatprep.subr.bf16.mxu0 0
    %208 = vmatpush2.bf16.msra.mxu0 0
    %209 = vmatprep.subr.bf16.mxu0 0
    %210 = vmatpush2.bf16.msra.mxu0 0
    %211 = vmatprep.subr.bf16.mxu0 0
    %212 = vmatpush2.bf16.msra.mxu0 0
    %213 = vmatprep.subr.bf16.mxu0 0
    %214 = vmatpush2.bf16.msra.mxu0 0
    %215 = vmatprep.subr.bf16.mxu0 0
    %216 = vmatpush2.bf16.msra.mxu0 0
    %217 = vmatprep.subr.bf16.mxu0 0
    %218 = vmatpush2.bf16.msra.mxu0 0
    %219 = vmatprep.subr.bf16.mxu0 0
    %220 = vmatpush2.bf16.msra.mxu0 0
    %221 = vmatprep.subr.bf16.mxu0 0
    %222 = vmatpush2.bf16.msra.mxu0 0
    %223 = vmatprep.mubr.bf16.mxu0 0
    %224 = vmatmul.mubr.bf16.gmra.mxu0 %v189
    %v225 = vpop.f32.mrf.mxu0
    %v226 = vadd.f32 %v130, %v225
    %v227 = vpop.f32.mrf.mxu0
    %v228 = vadd.f32 %v134, %v227
    %v229 = vpop.f32.mrf.mxu0
    %v230 = vadd.f32 %v130, %v229
    %v231 = vpop.f32.mrf.mxu0
    %v232 = vadd.f32 %v134, %v231
    %233 = vdwg.mxu0
    %234 = vmatprep.subr.bf16.mxu0 0
    %235 = vmatpush1.bf16.msra.mxu0 0
    %236 = vmatprep.subr.bf16.mxu0 0
    %237 = vmatpush1.bf16.msra.mxu0 0
    %238 = vmatprep.subr.bf16.mxu0 0
    %239 = vmatpush1.bf16.msra.mxu0 0
    %240 = vmatprep.subr.bf16.mxu0 0
    %241 = vmatpush1.bf16.msra.mxu0 0
    %242 = vmatprep.subr.bf16.mxu0 0
    %243 = vmatpush1.bf16.msra.mxu0 0
    %244 = vmatprep.subr.bf16.mxu0 0
    %245 = vmatpush1.bf16.msra.mxu0 0
    %246 = vmatprep.subr.bf16.mxu0 %v178
    %247 = vmatpush1.bf16.msra.mxu0 %v177
    %248 = vmatprep.subr.bf16.mxu0 %v174
    %249 = vmatpush1.bf16.msra.mxu0 %v173
    %250 = vmatprep.subr.bf16.mxu0 0
    %251 = vmatpush2.bf16.msra.mxu0 0
    %252 = vmatprep.subr.bf16.mxu0 0
    %253 = vmatpush2.bf16.msra.mxu0 0
    %254 = vmatprep.subr.bf16.mxu0 0
    %255 = vmatpush2.bf16.msra.mxu0 0
    %256 = vmatprep.subr.bf16.mxu0 0
    %257 = vmatpush2.bf16.msra.mxu0 0
    %258 = vmatprep.subr.bf16.mxu0 0
    %259 = vmatpush2.bf16.msra.mxu0 0
    %260 = vmatprep.subr.bf16.mxu0 0
    %261 = vmatpush2.bf16.msra.mxu0 0
    %262 = vmatprep.subr.bf16.mxu0 0
    %263 = vmatpush2.bf16.msra.mxu0 0
    %264 = vmatprep.subr.bf16.mxu0 0
    %265 = vmatpush2.bf16.msra.mxu0 0
    %266 = vmatprep.mubr.bf16.mxu0 0
    %267 = vmatmul.mubr.bf16.gmra.mxu0 %v189
    %v268 = vpop.f32.mrf.mxu0
    %v269 = vadd.f32 %v138, %v268
    %v270 = vpop.f32.mrf.mxu0
    %v271 = vadd.f32 %v142, %v270
    %v272 = vpop.f32.mrf.mxu0
    %v273 = vadd.f32 %v138, %v272
    %v274 = vpop.f32.mrf.mxu0
    %v275 = vadd.f32 %v142, %v274
    %276 = vdwg.mxu0
    %v277 = vmax.f32 %v226, 0.0
    %v278 = vmax.f32 %v228, 0.0
    %v279 = vmax.f32 %v269, 0.0
    %v280 = vmax.f32 %v271, 0.0
    %v281 = vmax.f32 %v230, 0.0
    %v282 = vmax.f32 %v232, 0.0
    %v283 = vmax.f32 %v273, 0.0
    %v284 = vmax.f32 %v275, 0.0
    %v285 = vpack.c.bf16 %v281, %v277
    %v286 = vpack.c.bf16 %v282, %v278
    %v287 = vpack.c.bf16 %v283, %v279
    %v288 = vpack.c.bf16 %v284, %v280
    %v289 = vld [vmem:[#allocation8] sm:$0xff]
    %v290 = vld [vmem:[#allocation8 + $0x8] sm:$0xff]
    %v291 = vld [vmem:[#allocation8 + $0x10] sm:$0xff]
    %v292 = vld [vmem:[#allocation8 + $0x18] sm:$0xff]
    %v293 = vld [vmem:[#allocation8 + $0x20] sm:$0xff]
    %v294 = vld [vmem:[#allocation8 + $0x28] sm:$0xff]
    %v295 = vld [vmem:[#allocation8 + $0x30] sm:$0xff]
    %v296 = vld [vmem:[#allocation8 + $0x38] sm:$0xff]
    %v297 = vld [vmem:[#allocation8 + $0x40] sm:$0xff]
    %v298 = vld [vmem:[#allocation8 + $0x48] sm:$0xff]
    %v299 = vld [vmem:[#allocation8 + $0x50] sm:$0xff]
    %v300 = vld [vmem:[#allocation8 + $0x58] sm:$0xff]
    %v301 = vld [vmem:[#allocation8 + $0x60] sm:$0xff]
    %v302 = vld [vmem:[#allocation8 + $0x68] sm:$0xff]
    %v303 = vld [vmem:[#allocation8 + $0x70] sm:$0xff]
    %v304 = vld [vmem:[#allocation8 + $0x78] sm:$0xff]
    %v305 = vld [vmem:[#allocation8 + $0x80] sm:$0xff]
    %v306 = vld [vmem:[#allocation8 + $0x88] sm:$0xff]
    %v307 = vld [vmem:[#allocation8 + $0x90] sm:$0xff]
    %v308 = vld [vmem:[#allocation8 + $0x98] sm:$0xff]
    %v309 = vld [vmem:[#allocation8 + $0xa0] sm:$0xff]
    %v310 = vld [vmem:[#allocation8 + $0xa8] sm:$0xff]
    %v311 = vld [vmem:[#allocation8 + $0xb0] sm:$0xff]
    %v312 = vld [vmem:[#allocation8 + $0xb8] sm:$0xff]
    %v313 = vld [vmem:[#allocation8 + $0xc0] sm:$0xff]
    %v314 = vld [vmem:[#allocation8 + $0xc8] sm:$0xff]
    %v315 = vld [vmem:[#allocation8 + $0xd0] sm:$0xff]
    %v316 = vld [vmem:[#allocation8 + $0xd8] sm:$0xff]
    %v317 = vld [vmem:[#allocation8 + $0xe0] sm:$0xff]
    %v318 = vld [vmem:[#allocation8 + $0xe8] sm:$0xff]
    %v319 = vld [vmem:[#allocation8 + $0xf0] sm:$0xff]
    %v320 = vld [vmem:[#allocation8 + $0xf8] sm:$0xff]
    %v321 = vld [vmem:[#allocation8 + $0x100] sm:$0xff]
    %v322 = vld [vmem:[#allocation8 + $0x108] sm:$0xff]
    %v323 = vld [vmem:[#allocation8 + $0x110] sm:$0xff]
    %v324 = vld [vmem:[#allocation8 + $0x118] sm:$0xff]
    %v325 = vld [vmem:[#allocation8 + $0x120] sm:$0xff]
    %v326 = vld [vmem:[#allocation8 + $0x128] sm:$0xff]
    %v327 = vld [vmem:[#allocation8 + $0x130] sm:$0xff]
    %v328 = vld [vmem:[#allocation8 + $0x138] sm:$0xff]
    %v329 = vld [vmem:[#allocation8 + $0x140] sm:$0xff]
    %v330 = vld [vmem:[#allocation8 + $0x148] sm:$0xff]
    %v331 = vld [vmem:[#allocation8 + $0x150] sm:$0xff]
    %v332 = vld [vmem:[#allocation8 + $0x158] sm:$0xff]
    %v333 = vld [vmem:[#allocation8 + $0x160] sm:$0xff]
    %v334 = vld [vmem:[#allocation8 + $0x168] sm:$0xff]
    %v335 = vld [vmem:[#allocation8 + $0x170] sm:$0xff]
    %v336 = vld [vmem:[#allocation8 + $0x178] sm:$0xff]
    %v337 = vld [vmem:[#allocation8 + $0x180] sm:$0xff]
    %v338 = vld [vmem:[#allocation8 + $0x188] sm:$0xff]
    %v339 = vld [vmem:[#allocation8 + $0x190] sm:$0xff]
    %v340 = vld [vmem:[#allocation8 + $0x198] sm:$0xff]
    %v341 = vld [vmem:[#allocation8 + $0x1a0] sm:$0xff]
    %v342 = vld [vmem:[#allocation8 + $0x1a8] sm:$0xff]
    %v343 = vld [vmem:[#allocation8 + $0x1b0] sm:$0xff]
    %v344 = vld [vmem:[#allocation8 + $0x1b8] sm:$0xff]
    %v345 = vld [vmem:[#allocation8 + $0x1c0] sm:$0xff]
    %v346 = vld [vmem:[#allocation8 + $0x1c8] sm:$0xff]
    %v347 = vld [vmem:[#allocation8 + $0x1d0] sm:$0xff]
    %v348 = vld [vmem:[#allocation8 + $0x1d8] sm:$0xff]
    %v349 = vld [vmem:[#allocation8 + $0x1e0] sm:$0xff]
    %v350 = vld [vmem:[#allocation8 + $0x1e8] sm:$0xff]
    %v351 = vld [vmem:[#allocation8 + $0x1f0] sm:$0xff]
    %v352 = vld [vmem:[#allocation8 + $0x1f8] sm:$0xff]
    %v353 = vld [vmem:[%s4] sm:$0x3]
    %v355 = vlaneseq
    %v356 = vshrl.u32 %v355, 7
    %v357 = vsub.s32 0, %v356
    %v358 = vrot.slane %v353, %v357
    %v359 = vlaneseq
    %v360 = vshrl.u32 %v359, 7
    %v361 = vsub.s32 1, %v360
    %v362 = vrot.slane %v353, %v361
    %v429 = vunpack.c.l.b16 %v289
    %v430 = vunpack.c.h.b16 %v289
    %v431 = vunpack.c.l.b16 %v290
    %v432 = vunpack.c.h.b16 %v290
    %v433 = vunpack.c.l.b16 %v291
    %v434 = vunpack.c.h.b16 %v291
    %v435 = vunpack.c.l.b16 %v292
    %v436 = vunpack.c.h.b16 %v292
    %v437 = vunpack.c.l.b16 %v293
    %v438 = vunpack.c.h.b16 %v293
    %v439 = vunpack.c.l.b16 %v294
    %v440 = vunpack.c.h.b16 %v294
    %v441 = vunpack.c.l.b16 %v295
    %v442 = vunpack.c.h.b16 %v295
    %v443 = vunpack.c.l.b16 %v296
    %v444 = vunpack.c.h.b16 %v296
    %v445 = vunpack.c.l.b16 %v297
    %v446 = vunpack.c.h.b16 %v297
    %v447 = vunpack.c.l.b16 %v298
    %v448 = vunpack.c.h.b16 %v298
    %v449 = vunpack.c.l.b16 %v299
    %v450 = vunpack.c.h.b16 %v299
    %v451 = vunpack.c.l.b16 %v300
    %v452 = vunpack.c.h.b16 %v300
    %v453 = vunpack.c.l.b16 %v301
    %v454 = vunpack.c.h.b16 %v301
    %v455 = vunpack.c.l.b16 %v302
    %v456 = vunpack.c.h.b16 %v302
    %v457 = vunpack.c.l.b16 %v303
    %v458 = vunpack.c.h.b16 %v303
    %v459 = vunpack.c.l.b16 %v304
    %v460 = vunpack.c.h.b16 %v304
    %v461 = vunpack.c.l.b16 %v305
    %v462 = vunpack.c.h.b16 %v305
    %v463 = vunpack.c.l.b16 %v306
    %v464 = vunpack.c.h.b16 %v306
    %v465 = vunpack.c.l.b16 %v307
    %v466 = vunpack.c.h.b16 %v307
    %v467 = vunpack.c.l.b16 %v308
    %v468 = vunpack.c.h.b16 %v308
    %v469 = vunpack.c.l.b16 %v309
    %v470 = vunpack.c.h.b16 %v309
    %v471 = vunpack.c.l.b16 %v310
    %v472 = vunpack.c.h.b16 %v310
    %v473 = vunpack.c.l.b16 %v311
    %v474 = vunpack.c.h.b16 %v311
    %v475 = vunpack.c.l.b16 %v312
    %v476 = vunpack.c.h.b16 %v312
    %v477 = vunpack.c.l.b16 %v313
    %v478 = vunpack.c.h.b16 %v313
    %v479 = vunpack.c.l.b16 %v314
    %v480 = vunpack.c.h.b16 %v314
    %v481 = vunpack.c.l.b16 %v315
    %v482 = vunpack.c.h.b16 %v315
    %v483 = vunpack.c.l.b16 %v316
    %v484 = vunpack.c.h.b16 %v316
    %v485 = vunpack.c.l.b16 %v317
    %v486 = vunpack.c.h.b16 %v317
    %v487 = vunpack.c.l.b16 %v318
    %v488 = vunpack.c.h.b16 %v318
    %v489 = vunpack.c.l.b16 %v319
    %v490 = vunpack.c.h.b16 %v319
    %v491 = vunpack.c.l.b16 %v320
    %v492 = vunpack.c.h.b16 %v320
    %v493 = vunpack.c.l.b16 %v321
    %v494 = vunpack.c.h.b16 %v321
    %v495 = vunpack.c.l.b16 %v322
    %v496 = vunpack.c.h.b16 %v322
    %v497 = vunpack.c.l.b16 %v323
    %v498 = vunpack.c.h.b16 %v323
    %v499 = vunpack.c.l.b16 %v324
    %v500 = vunpack.c.h.b16 %v324
    %v501 = vunpack.c.l.b16 %v325
    %v502 = vunpack.c.h.b16 %v325
    %v503 = vunpack.c.l.b16 %v326
    %v504 = vunpack.c.h.b16 %v326
    %v505 = vunpack.c.l.b16 %v327
    %v506 = vunpack.c.h.b16 %v327
    %v507 = vunpack.c.l.b16 %v328
    %v508 = vunpack.c.h.b16 %v328
    %v509 = vunpack.c.l.b16 %v329
    %v510 = vunpack.c.h.b16 %v329
    %v511 = vunpack.c.l.b16 %v330
    %v512 = vunpack.c.h.b16 %v330
    %v513 = vunpack.c.l.b16 %v331
    %v514 = vunpack.c.h.b16 %v331
    %v515 = vunpack.c.l.b16 %v332
    %v516 = vunpack.c.h.b16 %v332
    %v517 = vunpack.c.l.b16 %v333
    %v518 = vunpack.c.h.b16 %v333
    %v519 = vunpack.c.l.b16 %v334
    %v520 = vunpack.c.h.b16 %v334
    %v521 = vunpack.c.l.b16 %v335
    %v522 = vunpack.c.h.b16 %v335
    %v523 = vunpack.c.l.b16 %v336
    %v524 = vunpack.c.h.b16 %v336
    %v525 = vunpack.c.l.b16 %v337
    %v526 = vunpack.c.h.b16 %v337
    %v527 = vunpack.c.l.b16 %v338
    %v528 = vunpack.c.h.b16 %v338
    %v529 = vunpack.c.l.b16 %v339
    %v530 = vunpack.c.h.b16 %v339
    %v531 = vunpack.c.l.b16 %v340
    %v532 = vunpack.c.h.b16 %v340
    %v533 = vunpack.c.l.b16 %v341
    %v534 = vunpack.c.h.b16 %v341
    %v535 = vunpack.c.l.b16 %v342
    %v536 = vunpack.c.h.b16 %v342
    %v537 = vunpack.c.l.b16 %v343
    %v538 = vunpack.c.h.b16 %v343
    %v539 = vunpack.c.l.b16 %v344
    %v540 = vunpack.c.h.b16 %v344
    %v541 = vunpack.c.l.b16 %v345
    %v542 = vunpack.c.h.b16 %v345
    %v543 = vunpack.c.l.b16 %v346
    %v544 = vunpack.c.h.b16 %v346
    %v545 = vunpack.c.l.b16 %v347
    %v546 = vunpack.c.h.b16 %v347
    %v547 = vunpack.c.l.b16 %v348
    %v548 = vunpack.c.h.b16 %v348
    %v549 = vunpack.c.l.b16 %v349
    %v550 = vunpack.c.h.b16 %v349
    %v551 = vunpack.c.l.b16 %v350
    %v552 = vunpack.c.h.b16 %v350
    %v553 = vunpack.c.l.b16 %v351
    %v554 = vunpack.c.h.b16 %v351
    %v555 = vunpack.c.l.b16 %v352
    %v556 = vunpack.c.h.b16 %v352
    %v557 = vpack.c.b16 %v431, %v429
    %v558 = vpack.c.b16 %v432, %v430
    %v559 = vpack.c.b16 %v435, %v433
    %v560 = vpack.c.b16 %v436, %v434
    %v561 = vpack.c.b16 %v439, %v437
    %v562 = vpack.c.b16 %v440, %v438
    %v563 = vpack.c.b16 %v443, %v441
    %v564 = vpack.c.b16 %v444, %v442
    %v565 = vpack.c.b16 %v447, %v445
    %v566 = vpack.c.b16 %v448, %v446
    %v567 = vpack.c.b16 %v451, %v449
    %v568 = vpack.c.b16 %v452, %v450
    %v569 = vpack.c.b16 %v455, %v453
    %v570 = vpack.c.b16 %v456, %v454
    %v571 = vpack.c.b16 %v459, %v457
    %v572 = vpack.c.b16 %v460, %v458
    %v573 = vpack.c.b16 %v463, %v461
    %v574 = vpack.c.b16 %v464, %v462
    %v575 = vpack.c.b16 %v467, %v465
    %v576 = vpack.c.b16 %v468, %v466
    %v577 = vpack.c.b16 %v471, %v469
    %v578 = vpack.c.b16 %v472, %v470
    %v579 = vpack.c.b16 %v475, %v473
    %v580 = vpack.c.b16 %v476, %v474
    %v581 = vpack.c.b16 %v479, %v477
    %v582 = vpack.c.b16 %v480, %v478
    %v583 = vpack.c.b16 %v483, %v481
    %v584 = vpack.c.b16 %v484, %v482
    %v585 = vpack.c.b16 %v487, %v485
    %v586 = vpack.c.b16 %v488, %v486
    %v587 = vpack.c.b16 %v491, %v489
    %v588 = vpack.c.b16 %v492, %v490
    %v589 = vpack.c.b16 %v495, %v493
    %v590 = vpack.c.b16 %v496, %v494
    %v591 = vpack.c.b16 %v499, %v497
    %v592 = vpack.c.b16 %v500, %v498
    %v593 = vpack.c.b16 %v503, %v501
    %v594 = vpack.c.b16 %v504, %v502
    %v595 = vpack.c.b16 %v507, %v505
    %v596 = vpack.c.b16 %v508, %v506
    %v597 = vpack.c.b16 %v511, %v509
    %v598 = vpack.c.b16 %v512, %v510
    %v599 = vpack.c.b16 %v515, %v513
    %v600 = vpack.c.b16 %v516, %v514
    %v601 = vpack.c.b16 %v519, %v517
    %v602 = vpack.c.b16 %v520, %v518
    %v603 = vpack.c.b16 %v523, %v521
    %v604 = vpack.c.b16 %v524, %v522
    %v605 = vpack.c.b16 %v527, %v525
    %v606 = vpack.c.b16 %v528, %v526
    %v607 = vpack.c.b16 %v531, %v529
    %v608 = vpack.c.b16 %v532, %v530
    %v609 = vpack.c.b16 %v535, %v533
    %v610 = vpack.c.b16 %v536, %v534
    %v611 = vpack.c.b16 %v539, %v537
    %v612 = vpack.c.b16 %v540, %v538
    %v613 = vpack.c.b16 %v543, %v541
    %v614 = vpack.c.b16 %v544, %v542
    %v615 = vpack.c.b16 %v547, %v545
    %v616 = vpack.c.b16 %v548, %v546
    %v617 = vpack.c.b16 %v551, %v549
    %v618 = vpack.c.b16 %v552, %v550
    %v619 = vpack.c.b16 %v555, %v553
    %v620 = vpack.c.b16 %v556, %v554
    %685 = vmatprep.subr.bf16.mxu0 %v572
    %686 = vmatpush1.bf16.msra.mxu0 %v571
    %687 = vmatprep.subr.bf16.mxu0 %v570
    %688 = vmatpush1.bf16.msra.mxu0 %v569
    %689 = vmatprep.subr.bf16.mxu0 %v568
    %690 = vmatpush1.bf16.msra.mxu0 %v567
    %691 = vmatprep.subr.bf16.mxu0 %v566
    %692 = vmatpush1.bf16.msra.mxu0 %v565
    %693 = vmatprep.subr.bf16.mxu0 %v564
    %694 = vmatpush1.bf16.msra.mxu0 %v563
    %695 = vmatprep.subr.bf16.mxu0 %v562
    %696 = vmatpush1.bf16.msra.mxu0 %v561
    %697 = vmatprep.subr.bf16.mxu0 %v560
    %698 = vmatpush1.bf16.msra.mxu0 %v559
    %699 = vmatprep.subr.bf16.mxu0 %v558
    %700 = vmatpush1.bf16.msra.mxu0 %v557
    %701 = vmatprep.subr.bf16.mxu0 %v588
    %702 = vmatpush2.bf16.msra.mxu0 %v587
    %703 = vmatprep.subr.bf16.mxu0 %v586
    %704 = vmatpush2.bf16.msra.mxu0 %v585
    %705 = vmatprep.subr.bf16.mxu0 %v584
    %706 = vmatpush2.bf16.msra.mxu0 %v583
    %707 = vmatprep.subr.bf16.mxu0 %v582
    %708 = vmatpush2.bf16.msra.mxu0 %v581
    %709 = vmatprep.subr.bf16.mxu0 %v580
    %710 = vmatpush2.bf16.msra.mxu0 %v579
    %711 = vmatprep.subr.bf16.mxu0 %v578
    %712 = vmatpush2.bf16.msra.mxu0 %v577
    %713 = vmatprep.subr.bf16.mxu0 %v576
    %714 = vmatpush2.bf16.msra.mxu0 %v575
    %715 = vmatprep.subr.bf16.mxu0 %v574
    %716 = vmatpush2.bf16.msra.mxu0 %v573
    %717 = vmatprep.mubr.bf16.mxu0 %v286
    %718 = vmatmul.mubr.bf16.gmra.mxu0 %v285
    %v719 = vpop.f32.mrf.mxu0
    %v720 = vadd.f32 %v358, %v719
    %v721 = vpop.f32.mrf.mxu0
    %v722 = vadd.f32 %v362, %v721
    %v723 = vpop.f32.mrf.mxu0
    %v724 = vadd.f32 %v358, %v723
    %v725 = vpop.f32.mrf.mxu0
    %v726 = vadd.f32 %v362, %v725
    %727 = vdwg.mxu0
    %728 = vmatprep.subr.bf16.mxu0 %v604
    %729 = vmatpush1.bf16.msra.mxu0 %v603
    %730 = vmatprep.subr.bf16.mxu0 %v602
    %731 = vmatpush1.bf16.msra.mxu0 %v601
    %732 = vmatprep.subr.bf16.mxu0 %v600
    %733 = vmatpush1.bf16.msra.mxu0 %v599
    %734 = vmatprep.subr.bf16.mxu0 %v598
    %735 = vmatpush1.bf16.msra.mxu0 %v597
    %736 = vmatprep.subr.bf16.mxu0 %v596
    %737 = vmatpush1.bf16.msra.mxu0 %v595
    %738 = vmatprep.subr.bf16.mxu0 %v594
    %739 = vmatpush1.bf16.msra.mxu0 %v593
    %740 = vmatprep.subr.bf16.mxu0 %v592
    %741 = vmatpush1.bf16.msra.mxu0 %v591
    %742 = vmatprep.subr.bf16.mxu0 %v590
    %743 = vmatpush1.bf16.msra.mxu0 %v589
    %744 = vmatprep.subr.bf16.mxu0 %v620
    %745 = vmatpush2.bf16.msra.mxu0 %v619
    %746 = vmatprep.subr.bf16.mxu0 %v618
    %747 = vmatpush2.bf16.msra.mxu0 %v617
    %748 = vmatprep.subr.bf16.mxu0 %v616
    %749 = vmatpush2.bf16.msra.mxu0 %v615
    %750 = vmatprep.subr.bf16.mxu0 %v614
    %751 = vmatpush2.bf16.msra.mxu0 %v613
    %752 = vmatprep.subr.bf16.mxu0 %v612
    %753 = vmatpush2.bf16.msra.mxu0 %v611
    %754 = vmatprep.subr.bf16.mxu0 %v610
    %755 = vmatpush2.bf16.msra.mxu0 %v609
    %756 = vmatprep.subr.bf16.mxu0 %v608
    %757 = vmatpush2.bf16.msra.mxu0 %v607
    %758 = vmatprep.subr.bf16.mxu0 %v606
    %759 = vmatpush2.bf16.msra.mxu0 %v605
    %760 = vmatprep.mubr.bf16.mxu0 %v288
    %761 = vmatmul.mubr.bf16.gmra.mxu0 %v287
    %v762 = vpop.f32.mrf.mxu0
    %v763 = vadd.f32 %v720, %v762
    %v764 = vpop.f32.mrf.mxu0
    %v765 = vadd.f32 %v722, %v764
    %v766 = vpop.f32.mrf.mxu0
    %v767 = vadd.f32 %v724, %v766
    %v768 = vpop.f32.mrf.mxu0
    %v769 = vadd.f32 %v726, %v768
    %770 = vdwg.mxu0
    %v771 = vmax.f32 %v763, 0.0
    %v772 = vmax.f32 %v765, 0.0
    %v773 = vmax.f32 %v767, 0.0
    %v774 = vmax.f32 %v769, 0.0
    %v775 = vpack.c.bf16 %v773, %v771
    %v776 = vpack.c.bf16 %v774, %v772
    %v777 = vld [vmem:[#allocation10] sm:$0xf]
    %v778 = vld [vmem:[#allocation10 + $0x4] sm:$0xf]
    %v779 = vld [vmem:[#allocation10 + $0x8] sm:$0xf]
    %v780 = vld [vmem:[#allocation10 + $0xc] sm:$0xf]
    %v781 = vld [vmem:[#allocation10 + $0x10] sm:$0xf]
    %v782 = vld [vmem:[#allocation10 + $0x14] sm:$0xf]
    %v783 = vld [vmem:[#allocation10 + $0x18] sm:$0xf]
    %v784 = vld [vmem:[#allocation10 + $0x1c] sm:$0xf]
    %v785 = vld [vmem:[#allocation10 + $0x20] sm:$0xf]
    %v786 = vld [vmem:[#allocation10 + $0x24] sm:$0xf]
    %v787 = vld [vmem:[#allocation10 + $0x28] sm:$0xf]
    %v788 = vld [vmem:[#allocation10 + $0x2c] sm:$0xf]
    %v789 = vld [vmem:[#allocation10 + $0x30] sm:$0xf]
    %v790 = vld [vmem:[#allocation10 + $0x34] sm:$0xf]
    %v791 = vld [vmem:[#allocation10 + $0x38] sm:$0xf]
    %v792 = vld [vmem:[#allocation10 + $0x3c] sm:$0xf]
    %v793 = vld [vmem:[#allocation10 + $0x40] sm:$0xf]
    %v794 = vld [vmem:[#allocation10 + $0x44] sm:$0xf]
    %v795 = vld [vmem:[#allocation10 + $0x48] sm:$0xf]
    %v796 = vld [vmem:[#allocation10 + $0x4c] sm:$0xf]
    %v797 = vld [vmem:[#allocation10 + $0x50] sm:$0xf]
    %v798 = vld [vmem:[#allocation10 + $0x54] sm:$0xf]
    %v799 = vld [vmem:[#allocation10 + $0x58] sm:$0xf]
    %v800 = vld [vmem:[#allocation10 + $0x5c] sm:$0xf]
    %v801 = vld [vmem:[#allocation10 + $0x60] sm:$0xf]
    %v802 = vld [vmem:[#allocation10 + $0x64] sm:$0xf]
    %v803 = vld [vmem:[#allocation10 + $0x68] sm:$0xf]
    %v804 = vld [vmem:[#allocation10 + $0x6c] sm:$0xf]
    %v805 = vld [vmem:[#allocation10 + $0x70] sm:$0xf]
    %v806 = vld [vmem:[#allocation10 + $0x74] sm:$0xf]
    %v807 = vld [vmem:[#allocation10 + $0x78] sm:$0xf]
    %v808 = vld [vmem:[#allocation10 + $0x7c] sm:$0xf]
    %v809 = vld [vmem:[%s6] sm:$0x1]
    %v811 = vlaneseq
    %v812 = vshrl.u32 %v811, 7
    %v813 = vsub.s32 0, %v812
    %v814 = vrot.slane %v809, %v813
    %v848 = vunpack.c.l.b16 %v777
    %v849 = vunpack.c.l.b16 %v778
    %v850 = vunpack.c.l.b16 %v779
    %v851 = vunpack.c.l.b16 %v780
    %v852 = vunpack.c.l.b16 %v781
    %v853 = vunpack.c.l.b16 %v782
    %v854 = vunpack.c.l.b16 %v783
    %v855 = vunpack.c.l.b16 %v784
    %v856 = vunpack.c.l.b16 %v785
    %v857 = vunpack.c.l.b16 %v786
    %v858 = vunpack.c.l.b16 %v787
    %v859 = vunpack.c.l.b16 %v788
    %v860 = vunpack.c.l.b16 %v789
    %v861 = vunpack.c.l.b16 %v790
    %v862 = vunpack.c.l.b16 %v791
    %v863 = vunpack.c.l.b16 %v792
    %v864 = vunpack.c.l.b16 %v793
    %v865 = vunpack.c.l.b16 %v794
    %v866 = vunpack.c.l.b16 %v795
    %v867 = vunpack.c.l.b16 %v796
    %v868 = vunpack.c.l.b16 %v797
    %v869 = vunpack.c.l.b16 %v798
    %v870 = vunpack.c.l.b16 %v799
    %v871 = vunpack.c.l.b16 %v800
    %v872 = vunpack.c.l.b16 %v801
    %v873 = vunpack.c.l.b16 %v802
    %v874 = vunpack.c.l.b16 %v803
    %v875 = vunpack.c.l.b16 %v804
    %v876 = vunpack.c.l.b16 %v805
    %v877 = vunpack.c.l.b16 %v806
    %v878 = vunpack.c.l.b16 %v807
    %v879 = vunpack.c.l.b16 %v808
    %v880 = vpack.c.b16 %v849, %v848
    %v881 = vpack.c.b16 %v851, %v850
    %v882 = vpack.c.b16 %v853, %v852
    %v883 = vpack.c.b16 %v855, %v854
    %v884 = vpack.c.b16 %v857, %v856
    %v885 = vpack.c.b16 %v859, %v858
    %v886 = vpack.c.b16 %v861, %v860
    %v887 = vpack.c.b16 %v863, %v862
    %v888 = vpack.c.b16 %v865, %v864
    %v889 = vpack.c.b16 %v867, %v866
    %v890 = vpack.c.b16 %v869, %v868
    %v891 = vpack.c.b16 %v871, %v870
    %v892 = vpack.c.b16 %v873, %v872
    %v893 = vpack.c.b16 %v875, %v874
    %v894 = vpack.c.b16 %v877, %v876
    %v895 = vpack.c.b16 %v879, %v878
    %912 = vmatprep.subr.bf16.mxu0 0
    %913 = vmatpush1.bf16.msra.mxu0 %v887
    %914 = vmatprep.subr.bf16.mxu0 0
    %915 = vmatpush1.bf16.msra.mxu0 %v886
    %916 = vmatprep.subr.bf16.mxu0 0
    %917 = vmatpush1.bf16.msra.mxu0 %v885
    %918 = vmatprep.subr.bf16.mxu0 0
    %919 = vmatpush1.bf16.msra.mxu0 %v884
    %920 = vmatprep.subr.bf16.mxu0 0
    %921 = vmatpush1.bf16.msra.mxu0 %v883
    %922 = vmatprep.subr.bf16.mxu0 0
    %923 = vmatpush1.bf16.msra.mxu0 %v882
    %924 = vmatprep.subr.bf16.mxu0 0
    %925 = vmatpush1.bf16.msra.mxu0 %v881
    %926 = vmatprep.subr.bf16.mxu0 0
    %927 = vmatpush1.bf16.msra.mxu0 %v880
    %928 = vmatprep.subr.bf16.mxu0 0
    %929 = vmatpush2.bf16.msra.mxu0 %v895
    %930 = vmatprep.subr.bf16.mxu0 0
    %931 = vmatpush2.bf16.msra.mxu0 %v894
    %932 = vmatprep.subr.bf16.mxu0 0
    %933 = vmatpush2.bf16.msra.mxu0 %v893
    %934 = vmatprep.subr.bf16.mxu0 0
    %935 = vmatpush2.bf16.msra.mxu0 %v892
    %936 = vmatprep.subr.bf16.mxu0 0
    %937 = vmatpush2.bf16.msra.mxu0 %v891
    %938 = vmatprep.subr.bf16.mxu0 0
    %939 = vmatpush2.bf16.msra.mxu0 %v890
    %940 = vmatprep.subr.bf16.mxu0 0
    %941 = vmatpush2.bf16.msra.mxu0 %v889
    %942 = vmatprep.subr.bf16.mxu0 0
    %943 = vmatpush2.bf16.msra.mxu0 %v888
    %944 = vmatprep.mubr.bf16.mxu0 %v776
    %945 = vmatmul.mubr.bf16.gmra.mxu0 %v775
    %v946 = vpop.f32.mrf.mxu0
    %v947 = vadd.f32 %v814, %v946
    %v948 = vpop.f32.mrf.mxu0
    %v949 = vpop.f32.mrf.mxu0
    %v950 = vadd.f32 %v814, %v949
    %v951 = vpop.f32.mrf.mxu0
    %952 = vdwg.mxu0
    %v953 = vmax.f32 %v947, 0.0
    %v954 = vmax.f32 %v950, 0.0
    %v955 = vpack.c.bf16 %v954, %v953
    %v956 = vld [vmem:[#allocation11] sm:$0xf]
    %v957 = vld [vmem:[#allocation11 + $0x4] sm:$0xf]
    %v958 = vld [vmem:[#allocation11 + $0x8] sm:$0xf]
    %v959 = vld [vmem:[#allocation11 + $0xc] sm:$0xf]
    %v960 = vld [vmem:[#allocation11 + $0x10] sm:$0xf]
    %v961 = vld [vmem:[#allocation11 + $0x14] sm:$0xf]
    %v962 = vld [vmem:[#allocation11 + $0x18] sm:$0xf]
    %v963 = vld [vmem:[#allocation11 + $0x1c] sm:$0xf]
    %v964 = vld [vmem:[#allocation11 + $0x20] sm:$0xf]
    %v965 = vld [vmem:[#allocation11 + $0x24] sm:$0xf]
    %v966 = vld [vmem:[#allocation11 + $0x28] sm:$0xf]
    %v967 = vld [vmem:[#allocation11 + $0x2c] sm:$0xf]
    %v968 = vld [vmem:[#allocation11 + $0x30] sm:$0xf]
    %v969 = vld [vmem:[#allocation11 + $0x34] sm:$0xf]
    %v970 = vld [vmem:[#allocation11 + $0x38] sm:$0xf]
    %v971 = vld [vmem:[#allocation11 + $0x3c] sm:$0xf]
    %v972 = vld [vmem:[%s8] sm:$0x1]
    %v974 = vlaneseq
    %v975 = vshrl.u32 %v974, 7
    %v976 = vsub.s32 0, %v975
    %v977 = vrot.slane %v972, %v976
    %v995 = vunpack.c.l.b16 %v956
    %v996 = vunpack.c.l.b16 %v957
    %v997 = vunpack.c.l.b16 %v958
    %v998 = vunpack.c.l.b16 %v959
    %v999 = vunpack.c.l.b16 %v960
    %v1000 = vunpack.c.l.b16 %v961
    %v1001 = vunpack.c.l.b16 %v962
    %v1002 = vunpack.c.l.b16 %v963
    %v1003 = vunpack.c.l.b16 %v964
    %v1004 = vunpack.c.l.b16 %v965
    %v1005 = vunpack.c.l.b16 %v966
    %v1006 = vunpack.c.l.b16 %v967
    %v1007 = vunpack.c.l.b16 %v968
    %v1008 = vunpack.c.l.b16 %v969
    %v1009 = vunpack.c.l.b16 %v970
    %v1010 = vunpack.c.l.b16 %v971
    %v1011 = vpack.c.b16 %v996, %v995
    %v1012 = vpack.c.b16 %v998, %v997
    %v1013 = vpack.c.b16 %v1000, %v999
    %v1014 = vpack.c.b16 %v1002, %v1001
    %v1015 = vpack.c.b16 %v1004, %v1003
    %v1016 = vpack.c.b16 %v1006, %v1005
    %v1017 = vpack.c.b16 %v1008, %v1007
    %v1018 = vpack.c.b16 %v1010, %v1009
    %1027 = vmatprep.subr.bf16.mxu0 0
    %1028 = vmatpush1.bf16.msra.mxu0 %v1018
    %1029 = vmatprep.subr.bf16.mxu0 0
    %1030 = vmatpush1.bf16.msra.mxu0 %v1017
    %1031 = vmatprep.subr.bf16.mxu0 0
    %1032 = vmatpush1.bf16.msra.mxu0 %v1016
    %1033 = vmatprep.subr.bf16.mxu0 0
    %1034 = vmatpush1.bf16.msra.mxu0 %v1015
    %1035 = vmatprep.subr.bf16.mxu0 0
    %1036 = vmatpush1.bf16.msra.mxu0 %v1014
    %1037 = vmatprep.subr.bf16.mxu0 0
    %1038 = vmatpush1.bf16.msra.mxu0 %v1013
    %1039 = vmatprep.subr.bf16.mxu0 0
    %1040 = vmatpush1.bf16.msra.mxu0 %v1012
    %1041 = vmatprep.subr.bf16.mxu0 0
    %1042 = vmatpush1.bf16.msra.mxu0 %v1011
    %1043 = vmatprep.subr.bf16.mxu0 0
    %1044 = vmatpush2.bf16.msra.mxu0 0
    %1045 = vmatprep.subr.bf16.mxu0 0
    %1046 = vmatpush2.bf16.msra.mxu0 0
    %1047 = vmatprep.subr.bf16.mxu0 0
    %1048 = vmatpush2.bf16.msra.mxu0 0
    %1049 = vmatprep.subr.bf16.mxu0 0
    %1050 = vmatpush2.bf16.msra.mxu0 0
    %1051 = vmatprep.subr.bf16.mxu0 0
    %1052 = vmatpush2.bf16.msra.mxu0 0
    %1053 = vmatprep.subr.bf16.mxu0 0
    %1054 = vmatpush2.bf16.msra.mxu0 0
    %1055 = vmatprep.subr.bf16.mxu0 0
    %1056 = vmatpush2.bf16.msra.mxu0 0
    %1057 = vmatprep.subr.bf16.mxu0 0
    %1058 = vmatpush2.bf16.msra.mxu0 0
    %1059 = vmatprep.mubr.bf16.mxu0 0
    %1060 = vmatmul.mubr.bf16.gmra.mxu0 %v955
    %v1061 = vpop.f32.mrf.mxu0
    %v1062 = vadd.f32 %v977, %v1061
    %v1063 = vpop.f32.mrf.mxu0
    %v1064 = vpop.f32.mrf.mxu0
    %v1065 = vadd.f32 %v977, %v1064
    %v1066 = vpop.f32.mrf.mxu0
    %1067 = vdwg.mxu0
    %v1068 = vpack.c.bf16 %v1065, %v1062
    %v1070 = vunpack.c.l.b16 %v1068
    %v1071 = vunpack.c.h.b16 %v1068
    %v1072 = vpack.c.b16 %v1070, %v1070
    %v1073 = vpack.c.b16 %v1071, %v1071
    %1076 = vst [vmem:[#allocation13] sm:$0xf] %v1072
    %1077 = vst [vmem:[#allocation13 + $0x4] sm:$0xf] %v1073
    // Predicated region
    $region62: #{tpu_custom_call.1} parent=1 // pred_check
      _
    $region63: #{tpu_custom_call.1} parent=1 // pred_check_branch
      %1079 = sbr.rel (0) target = $region65
    $region64: #{tpu_custom_call.1} parent=1 // pred_region
      %s1081 = ssub.s32 128, 128
      %1082 = vsyncadd [#allocation4], %s1081
      %s1083 = sshll.u32 [#allocation13], 4
      %s1084 = int_to_ptr.vmem [resolvable:$true] %s1083
      %1089 = dma.vmem_to_hbm [thread:$0]  %s1084, 128, %s9, [#allocation4], 64, 64, 4
    $region65: #{tpu_custom_call.1} parent=1 // pred_fallthru
      _
    // Predicated region
    $region66: #{tpu_custom_call.1} parent=1 // pred_check
      _
    $region67: #{tpu_custom_call.1} parent=1 // pred_check_branch
      %1091 = sbr.rel (0) target = $region69
    $region68: #{tpu_custom_call.1} parent=1 // pred_region
      %1092 = dma.done [#allocation4], 128
    $region69: #{tpu_custom_call.1} parent=1 // pred_fallthru
      _
    %1093 = vsyncpa [#allocation3], 1
    %1094 = vsyncpa [#allocation6], 1
    %1095 = vsyncpa [#allocation9], 1
    %1096 = vsyncpa [#allocation12], 1
    %1097 = vsyncpa [#allocation4], 1

</llo_original>
